<compile_context>
chip_gen: v7x
topology: tpu7x:2x2x1
jax: 0.10.0
libtpu: 0.0.40
codegen_flags: <defaults>
</compile_context>

<pallas_src>
import functools

import jax
import jax.numpy as jnp
from jax.experimental import pallas as pl
from jax.experimental.pallas import tpu as pltpu


def _mean_pool_kernel(x_ref, o_ref, acc_ref, *, inv_s):
    # x_ref  : (TB, TS, Dp) VMEM tile -- one chunk of the sequence axis
    # o_ref  : (TB, Dp)     VMEM output tile (resident across the S grid axis)
    # acc_ref: (TB, Dp)     f32 scratch accumulator (persists across grid steps)
    s = pl.program_id(1)

    @pl.when(s == 0)
    def _():
        acc_ref[...] = jnp.zeros_like(acc_ref)

    # Reduce the sequence chunk directly with an f32 accumulation dtype; this
    # avoids materializing a second full-tile f32 copy of the input.
    acc_ref[...] += jnp.sum(x_ref[...], axis=1, dtype=jnp.float32)

    @pl.when(s == pl.num_programs(1) - 1)
    def _():
        # Single multiply by 1/S on the (TB, Dp) result at finalize.
        o_ref[...] = (acc_ref[...] * inv_s).astype(o_ref.dtype)


def pooling_transformer_output(x, *, seq_tile_rows=512, seq_tile_bytes=8 << 20):
    """Mean over dim=1 of a (B, S, D) array, computed as a streaming Pallas reduction."""
    B, S, D = x.shape
    orig_dtype = x.dtype
    itemsize = jnp.dtype(orig_dtype).itemsize

    # ---- tiling choices -----------------------------------------------------
    # Lane-dense output: pad hidden dim up to a multiple of 128 lanes so the
    # output stores are unmasked full-lane vst (biggest lever for small outputs).
    LANE = 128
    D_pad = D if D % LANE == 0 else ((D + LANE - 1) // LANE) * LANE

    # Batch tile: 8 sublane rows per output store when possible.
    if B % 8 == 0:
        TB, B_pad = 8, B
    elif B <= 8:
        TB, B_pad = B, B               # full-extent block, no batch padding
    else:
        TB = 8
        B_pad = ((B + 7) // 8) * 8     # zero-pad batch; padded rows sliced off

    # Sequence tile: multiple of 8 sublanes, bounded so (2 double-buffered input
    # tiles + accumulator) stays far below every generation's scoped VMEM.
    max_rows = max(8, seq_tile_bytes // max(1, TB * D_pad * itemsize))
    TS = min(seq_tile_rows, max_rows, ((S + 7) // 8) * 8)
    TS = max(8, (TS // 8) * 8)
    S_pad = ((S + TS - 1) // TS) * TS

    # Zero padding is safe: padded zeros contribute nothing to the sum and we
    # divide by the true S; padded batch rows / hidden cols are sliced off.
    if (B_pad, S_pad, D_pad) != (B, S, D):
        x = jnp.pad(x, ((0, B_pad - B), (0, S_pad - S), (0, D_pad - D)))

    grid = (B_pad // TB, S_pad // TS)
    kernel = functools.partial(_mean_pool_kernel, inv_s=1.0 / S)

    out = pl.pallas_call(
        kernel,
        out_shape=jax.ShapeDtypeStruct((B_pad, D_pad), orig_dtype),
        grid=grid,
        in_specs=[pl.BlockSpec((TB, TS, D_pad), lambda b, s: (b, s, 0))],
        out_specs=pl.BlockSpec((TB, D_pad), lambda b, s: (b, 0)),
        scratch_shapes=[pltpu.VMEM((TB, D_pad), jnp.float32)],
        compiler_params=pltpu.CompilerParams(
            dimension_semantics=("parallel", "arbitrary"),
            vmem_limit_bytes=40 * 1024 * 1024,
        ),
    )(x)

    if (B_pad, D_pad) != (B, D):
        out = out[:B, :D]
    return out


if __name__ == "__main__":
    key = jax.random.PRNGKey(0)
    B, S, D = 2, 8, 32  # small transformer-output-like shape
    x = jax.random.normal(key, (B, S, D), dtype=jnp.float32)

    out = pooling_transformer_output(x)
    out = jax.block_until_ready(out)

    ref = jnp.mean(x, axis=1)
    assert out.shape == (B, D), out.shape
    assert jnp.allclose(out, ref, atol=1e-5, rtol=1e-5), "mismatch vs reference"

    # A second, larger / non-aligned shape to exercise the tiled reduction path.
    x2 = jax.random.normal(jax.random.PRNGKey(1), (3, 50, 256), dtype=jnp.bfloat16)
    out2 = jax.block_until_ready(pooling_transformer_output(x2))
    ref2 = jnp.mean(x2.astype(jnp.float32), axis=1).astype(jnp.bfloat16)
    assert out2.shape == (3, 256), out2.shape
    assert jnp.allclose(out2.astype(jnp.float32), ref2.astype(jnp.float32),
                        atol=2e-2, rtol=2e-2), "bf16 mismatch vs reference"

    print("KERNEL_OK")
</pallas_src>

<mosaic_0001>
module attributes {stable_mosaic.version = 11 : i64} {
  func.func @_mean_pool_kernel(%arg0: i32, %arg1: i32, %arg2: memref<2x8x128xf32, #tpu.memory_space<vmem>>, %arg3: memref<2x128xf32, #tpu.memory_space<vmem>>, %arg4: memref<2x128xf32, #tpu.memory_space<vmem>>) attributes {dimension_semantics = [#tpu.dimension_semantics<parallel>, #tpu.dimension_semantics<arbitrary>], iteration_bounds = array<i64: 1, 1>, scalar_prefetch = 0 : i64, scratch_operands = 1 : i64, tpu.core_type = #tpu.core_type<tc>, window_params = [{transform_indices = @transform_0, window_bounds = array<i64: 2, 8, 128>}, {transform_indices = @transform_1, window_bounds = array<i64: 2, 128>}]} {
    %c0_i32 = arith.constant 0 : i32
    %0 = arith.cmpi eq, %arg1, %c0_i32 : i32
    %1 = arith.extui %0 : i1 to i32
    %c0_i32_0 = arith.constant 0 : i32
    %2 = arith.cmpi ne, %1, %c0_i32_0 : i32
    scf.if %2 {
      %cst_9 = arith.constant 0.000000e+00 : f32
      %11 = vector.broadcast %cst_9 : f32 to vector<2x128xf32>
      %c0_10 = arith.constant 0 : index
      %c0_11 = arith.constant 0 : index
      %12 = vector.load %arg4[%c0_10, %c0_11] : memref<2x128xf32, #tpu.memory_space<vmem>>, vector<2x128xf32>
      tpu.vector_store %arg4[%c0_10, %c0_11], %11 {strides = array<i32>} : memref<2x128xf32, #tpu.memory_space<vmem>>, vector<2x128xf32>,
    } else {
    }
    %c0 = arith.constant 0 : index
    %c0_1 = arith.constant 0 : index
    %3 = vector.load %arg4[%c0, %c0_1] : memref<2x128xf32, #tpu.memory_space<vmem>>, vector<2x128xf32>
    %c0_2 = arith.constant 0 : index
    %c0_3 = arith.constant 0 : index
    %c0_4 = arith.constant 0 : index
    %4 = vector.load %arg2[%c0_2, %c0_3, %c0_4] : memref<2x8x128xf32, #tpu.memory_space<vmem>>, vector<2x8x128xf32>
    %cst = arith.constant dense<0.000000e+00> : vector<2x128xf32>
    %5 = vector.multi_reduction <add>, %4, %cst [1] : vector<2x8x128xf32> to vector<2x128xf32>
    %6 = arith.addf %3, %5 : vector<2x128xf32>
    %c0_5 = arith.constant 0 : index
    %c0_6 = arith.constant 0 : index
    %7 = vector.load %arg4[%c0_5, %c0_6] : memref<2x128xf32, #tpu.memory_space<vmem>>, vector<2x128xf32>
    tpu.vector_store %arg4[%c0_5, %c0_6], %6 {strides = array<i32>} : memref<2x128xf32, #tpu.memory_space<vmem>>, vector<2x128xf32>,
    %c0_i32_7 = arith.constant 0 : i32
    %8 = arith.cmpi eq, %arg1, %c0_i32_7 : i32
    %9 = arith.extui %8 : i1 to i32
    %c0_i32_8 = arith.constant 0 : i32
    %10 = arith.cmpi ne, %9, %c0_i32_8 : i32
    scf.if %10 {
      %c0_9 = arith.constant 0 : index
      %c0_10 = arith.constant 0 : index
      %11 = vector.load %arg4[%c0_9, %c0_10] : memref<2x128xf32, #tpu.memory_space<vmem>>, vector<2x128xf32>
      %cst_11 = arith.constant 1.250000e-01 : f32
      %12 = vector.broadcast %cst_11 : f32 to vector<2x128xf32>
      %13 = arith.mulf %11, %12 : vector<2x128xf32>
      %c0_12 = arith.constant 0 : index
      %c0_13 = arith.constant 0 : index
      %14 = vector.load %arg3[%c0_12, %c0_13] : memref<2x128xf32, #tpu.memory_space<vmem>>, vector<2x128xf32>
      tpu.vector_store %arg3[%c0_12, %c0_13], %13 {strides = array<i32>} : memref<2x128xf32, #tpu.memory_space<vmem>>, vector<2x128xf32>,
    } else {
    }
    return
  }
  func.func @transform_0(%arg0: i32, %arg1: i32) -> (i32, i32, i32) {
    %c0_i32 = arith.constant 0 : i32
    %c0_i32_0 = arith.constant 0 : i32
    return %arg0, %arg1, %c0_i32 : i32, i32, i32
  }
  func.func @transform_1(%arg0: i32, %arg1: i32) -> (i32, i32) {
    %c0_i32 = arith.constant 0 : i32
    %c0_i32_0 = arith.constant 0 : i32
    return %arg0, %c0_i32 : i32, i32
  }
}

</mosaic_0001>

<llo_original>
// kernel: tpu_custom_call.1
$region0: #{tpu_custom_call.1}
  #allocation0 [shape = 'u32[]', space=smem, size = 0x4, offset = 0x4, fixed_abs, tag = 'smem constant byte address 0x4 - core index']
  #allocation1 [shape = 'u32[144,128]{1,0:T(1,128)}', space=vmem, size = 0x12000, scoped, tag = 'internal scratch']
  #allocation2 [shape = 'f32[2,128]{1,0:T(2,128)}', space=vmem, size = 0x400, scoped, tag = 'scratch operand']
  %s0 = inlined_call_operand.hbm [shape: f32[2,8,128], index: 0, kind: input, shape index: {}]
  %s1 = inlined_call_operand.hbm [shape: f32[2,128], index: 1, kind: output, shape index: {}]
  %s2 = sld [smem:[#allocation0]]
  $region26: #{tpu_custom_call.1} parent=0
    _
  %s4 = ssub.s32 1, %s2
  %s5 = scalar_select 0, %s4, %s2
  $region1: #{tpu_custom_call.1} parent=0
    #allocation3 [shape = 'u8[8192]{0}', space=vmem, size = 0x2000, scoped, tag = 'input window, operand 0, single buffered']
    #allocation4 [shape = 's32[1]{0}', space=sflag, size = 0x4, scoped, tag = 'scoped memory for tpu_custom_call.1']
    #allocation5 [shape = 's32[1]{0}', space=sflag, size = 0x4, scoped, tag = 'scoped memory for tpu_custom_call.1']
    #allocation6 [shape = 'u8[1024]{0}', space=vmem, size = 0x400, scoped, tag = 'output window, operand 0, single buffered']
    %6 = vsyncpa [#allocation4], 0
    %7 = vsyncpa [#allocation5], 0
    // Predicated region
    $region2: #{tpu_custom_call.1} parent=1 // pred_check
      _
    $region3: #{tpu_custom_call.1} parent=1 // pred_check_branch
      %9 = sbr.rel (0) target = $region5
    $region4: #{tpu_custom_call.1} parent=1 // pred_region
      %s11 = ssub.s32 256, 256
      %12 = vsyncadd [#allocation4], %s11
      %s13 = sshll.u32 [#allocation3], 4
      %s14 = int_to_ptr.vmem [resolvable:$true] %s13
      %19 = dma.hbm_to_vmem [thread:$0]  %s0, 256, %s14, [#allocation4], 128, 128, 8
    $region5: #{tpu_custom_call.1} parent=1 // pred_fallthru
      _
    // Predicated region
    $region6: #{tpu_custom_call.1} parent=1 // pred_check
      _
    $region7: #{tpu_custom_call.1} parent=1 // pred_check_branch
      %21 = sbr.rel (0) target = $region9
    $region8: #{tpu_custom_call.1} parent=1 // pred_region
      %22 = dma.done [#allocation4], 256
    $region9: #{tpu_custom_call.1} parent=1 // pred_fallthru
      _
    %p23 = scmp.eq.s32.totalorder 0, 0
    // Predicated region
    $region10: #{tpu_custom_call.1} parent=1 // pred_check
      %p24 = pneg %p23
    $region11: #{tpu_custom_call.1} parent=1 // pred_check_branch
      %26 = sbr.rel (%p24) target = $region13
    $region12: #{tpu_custom_call.1} parent=1 // pred_region
      %27 = vst [vmem:[#allocation2] sm:$0x3] 0.0
    $region13: #{tpu_custom_call.1} parent=1 // pred_fallthru
      _
    %v28 = vld [vmem:[#allocation2] sm:$0x3]
    %v29 = vld [vmem:[#allocation3] sm:$0xff]
    %v30 = vld [vmem:[#allocation3 + $0x8] sm:$0xff]
    %v31 = vrot.slane %v29, 4
    %v32 = vadd.f32 %v29, %v31
    %v33 = vrot.slane %v32, 2
    %v34 = vadd.f32 %v32, %v33
    %v35 = vrot.slane %v34, 1
    %v36 = vadd.f32 %v34, %v35
    %v37 = vrot.slane %v30, 4
    %v38 = vadd.f32 %v30, %v37
    %v39 = vrot.slane %v38, 2
    %v40 = vadd.f32 %v38, %v39
    %v41 = vrot.slane %v40, 1
    %v42 = vadd.f32 %v40, %v41
    %vm45 = vcmask 1041409
    %v46 = vsel %vm45, %v42, %v36
    %v48 = vadd.f32 %v28, %v46
    %49 = vst [vmem:[#allocation2] sm:$0x3] %v48
    // Predicated region
    $region14: #{tpu_custom_call.1} parent=1 // pred_check
      %p50 = pneg %p23
    $region15: #{tpu_custom_call.1} parent=1 // pred_check_branch
      %52 = sbr.rel (%p50) target = $region17
    $region16: #{tpu_custom_call.1} parent=1 // pred_region
      %v53 = vld [vmem:[#allocation2] sm:$0x3]
      %v54 = vmul.f32 %v53, 0.125
      %55 = vst [vmem:[#allocation6] sm:$0x3] %v54
    $region17: #{tpu_custom_call.1} parent=1 // pred_fallthru
      _
    // Predicated region
    $region18: #{tpu_custom_call.1} parent=1 // pred_check
      _
    $region19: #{tpu_custom_call.1} parent=1 // pred_check_branch
      %57 = sbr.rel (0) target = $region21
    $region20: #{tpu_custom_call.1} parent=1 // pred_region
      %s59 = ssub.s32 32, 32
      %60 = vsyncadd [#allocation5], %s59
      %s62 = sshll.u32 [#allocation6], 4
      %s63 = int_to_ptr.vmem [resolvable:$true] %s62
      %65 = dma.vmem_to_hbm [thread:$0]  %s63, 32, %s1, [#allocation5]
    $region21: #{tpu_custom_call.1} parent=1 // pred_fallthru
      _
    // Predicated region
    $region22: #{tpu_custom_call.1} parent=1 // pred_check
      _
    $region23: #{tpu_custom_call.1} parent=1 // pred_check_branch
      %67 = sbr.rel (0) target = $region25
    $region24: #{tpu_custom_call.1} parent=1 // pred_region
      %68 = dma.done [#allocation5], 32
    $region25: #{tpu_custom_call.1} parent=1 // pred_fallthru
      _
    %69 = vsyncpa [#allocation4], 1
    %70 = vsyncpa [#allocation5], 1

</llo_original>
